<compile_context>
chip_gen: v5e
topology: v5e:2x2
jax: 0.10.0
libtpu: 0.0.40
codegen_flags: <defaults>
</compile_context>

<pallas_src>
import functools

import jax
import jax.numpy as jnp
from jax.experimental import pallas as pl
from jax.experimental.pallas import tpu as pltpu

LANES = 128
DEFAULT_ROW_BLOCK = 4096   # (4096,128) f32 = 2 MiB/block


def _sublane_tile(dtype):
    itemsize = jnp.dtype(dtype).itemsize
    return max(8, 32 // max(1, itemsize))  # 8 for 4-byte, 16 for 2-byte dtypes


def _round_up(x, m):
    return ((x + m - 1) // m) * m


def _device_kind():
    try:
        return (jax.devices()[0].device_kind or "").lower()
    except Exception:
        return ""


def _masked_mse_kernel(yh_ref, y_ref, out_ref, acc_sq, acc_cnt, *,
                       total_rows, row_block, steps_per_core):
    c = pl.program_id(0)   # core-split axis (CORE_PARALLEL on v7x, size 1 otherwise)
    i = pl.program_id(1)   # "arbitrary" reduction axis

    @pl.when(i == 0)
    def _init():
        acc_sq[...] = jnp.zeros_like(acc_sq)
        acc_cnt[...] = jnp.zeros_like(acc_cnt)

    y = y_ref[...].astype(jnp.float32)
    yh = yh_ref[...].astype(jnp.float32)
    row_start = (c * steps_per_core + i) * row_block
    vregs = row_block // 8

    def accumulate(valid):
        # SELECT (not multiply-by-mask) so NaN/Inf garbage in padded rows of a
        # partial/duplicate block cannot poison the sum.
        d = jnp.where(valid, yh - y, 0.0)
        # Lane/sublane-preserving fold to one vreg: pure vreg-wise VPU adds.
        acc_sq[...] += (d * d).reshape(vregs, 8, LANES).sum(axis=0)
        acc_cnt[...] += valid.astype(jnp.int32).reshape(vregs, 8, LANES).sum(axis=0)

    # Hot path: interior blocks are fully in-bounds -> NaN mask only.
    @pl.when(row_start + row_block <= total_rows)
    def _full_block():
        accumulate(jnp.logical_not(jnp.isnan(y)))

    # Cold path: last block per array / clamped duplicate blocks on uneven
    # core splits -> additionally mask rows beyond the real array.
    @pl.when(row_start + row_block > total_rows)
    def _ragged_block():
        row_ids = row_start + jax.lax.broadcasted_iota(jnp.int32, y.shape, 0)
        accumulate((row_ids < total_rows) & jnp.logical_not(jnp.isnan(y)))

    @pl.when(i == pl.num_programs(1) - 1)
    def _finalize():
        s = jnp.sum(acc_sq[...])                        # one XLU reduce per core
        n = jnp.sum(acc_cnt[...]).astype(jnp.float32)   # exact int count -> f32
        lane = jax.lax.broadcasted_iota(jnp.int32, out_ref.shape, 1)
        # lane 0 = sum of squared errors, lane 1 = valid-element count
        out_ref[...] = jnp.where(lane == 0, s, jnp.where(lane == 1, n, 0.0))


def masked_mse_pallas(y_hat, y, *, row_block=None):
    """Returns (masked sum of (y_hat - y)^2, number of non-NaN elements of y)."""
    assert y_hat.shape == y.shape
    yh_flat = y_hat.reshape(-1)
    y_flat = y.reshape(-1)
    n = y_flat.shape[0]

    sub = max(_sublane_tile(y_hat.dtype), _sublane_tile(y.dtype))

    # Ragged tail (< 128 elems) in plain jnp: avoids padded HBM copies.
    n_main = (n // LANES) * LANES
    if n_main < n:
        tyh = yh_flat[n_main:].astype(jnp.float32)
        ty = y_flat[n_main:].astype(jnp.float32)
        tmask = jnp.logical_not(jnp.isnan(ty))
        td = jnp.where(tmask, tyh - ty, 0.0)
        tail_s = jnp.sum(td * td)
        tail_c = jnp.sum(tmask.astype(jnp.float32))
    else:
        tail_s = jnp.float32(0.0)
        tail_c = jnp.float32(0.0)

    if n_main == 0:          # nothing for the kernel to do (also guards n == 0)
        return tail_s, tail_c

    rows = n_main // LANES
    yh2 = yh_flat[:n_main].reshape(rows, LANES)   # free reshape (contiguous prefix)
    y2 = y_flat[:n_main].reshape(rows, LANES)

    if row_block is None:
        row_block = DEFAULT_ROW_BLOCK
        # TODO(synk): v6e could go to row_block=8192 with vmem_limit_bytes raised;
        # kept uniform here to stay within default scoped VMEM on all generations.
    row_block = min(_round_up(row_block, sub), _round_up(rows, sub))
    n_blocks = pl.cdiv(rows, row_block)

    kind = _device_kind()
    # 2-way core split only where there are 2 TensorCores (v7x); on single-TC
    # chips a split just wastes bandwidth on clamped duplicate blocks.
    num_cores = 2 if ("v7" in kind and n_blocks >= 2) else 1
    steps_per_core = pl.cdiv(n_blocks, num_cores)

    def in_map(c, i):
        # Clamp so an uneven split never indexes past the array; the in-kernel
        # row-bounds mask zeroes any duplicated block's contribution.
        return (jnp.minimum(c * steps_per_core + i, n_blocks - 1), 0)

    kernel = functools.partial(_masked_mse_kernel, total_rows=rows,
                               row_block=row_block,
                               steps_per_core=steps_per_core)

    if num_cores == 2:
        dims = (getattr(pltpu, "CORE_PARALLEL", "parallel"),
                getattr(pltpu, "ARBITRARY", "arbitrary"))
    else:
        dims = ("arbitrary", "arbitrary")

    out = pl.pallas_call(
        kernel,
        out_shape=jax.ShapeDtypeStruct((num_cores * 8, LANES), jnp.float32),
        grid_spec=pltpu.PrefetchScalarGridSpec(
            num_scalar_prefetch=0,
            grid=(num_cores, steps_per_core),
            in_specs=[pl.BlockSpec((row_block, LANES), in_map),
                      pl.BlockSpec((row_block, LANES), in_map)],
            out_specs=pl.BlockSpec((8, LANES), lambda c, i: (c, 0)),
            scratch_shapes=[pltpu.VMEM((8, LANES), jnp.float32),
                            pltpu.VMEM((8, LANES), jnp.int32)],
        ),
        compiler_params=pltpu.CompilerParams(dimension_semantics=dims),
    )(yh2, y2)

    partial = out.reshape(num_cores, 8, LANES)
    s = jnp.sum(partial[:, 0, 0]) + tail_s
    c = jnp.sum(partial[:, 0, 1]) + tail_c
    return s, c


class NgenLossPallas:
    """JAX/Pallas port of ngenLoss (default weights: variogram/fdc disabled)."""

    def __init__(self, distance_matrix=None, variogram_weight=0.0,
                 fdc_weight=0.0, v_order=2):
        self.distance_matrix = distance_matrix
        self.variogram_weight = variogram_weight
        self.fdc_weight = fdc_weight
        self.v_order = v_order

    def __call__(self, prediction, data):
        y_hat = prediction["y_hat"]
        y = data["y"]
        s, c = masked_mse_pallas(y_hat, y)
        mse_loss = s / c                      # == F.mse_loss(y_hat[mask], y[mask])
        loss = mse_loss
        losses = {"mse_loss": mse_loss}
        # TODO(synk): the reference forward's variogram/fdc branches call
        # self._variogram_loss / self._fdc_loss, which do not exist on the
        # PyTorch module (AttributeError if reached); with the default weights
        # (0.0) those branches are dead code, so only the masked-MSE path is
        # reproduced here.
        losses["total_loss"] = loss
        return loss, losses


if __name__ == "__main__":
    key = jax.random.PRNGKey(0)
    # 4*130*2 = 1040 elements: 8 full (.,128) rows through the kernel + a 16-elem
    # ragged tail handled in plain jnp (exercises both paths, no padding copies).
    B, T, D = 4, 130, 2
    k1, k2, k3 = jax.random.split(key, 3)
    y = jax.random.normal(k1, (B, T, D), dtype=jnp.float32)
    y_hat = jax.random.normal(k2, (B, T, D), dtype=jnp.float32)
    nan_mask = jax.random.bernoulli(k3, 0.2, (B, T, D))
    y = jnp.where(nan_mask, jnp.nan, y)

    loss_mod = NgenLossPallas()
    loss, losses = loss_mod({"y_hat": y_hat}, {"y": y})
    jax.block_until_ready(loss)

    m = ~jnp.isnan(y)
    ref = jnp.sum(jnp.where(m, y_hat - y, 0.0) ** 2) / jnp.sum(m)
    assert jnp.allclose(loss, ref, rtol=1e-5, atol=1e-6), (loss, ref)
    assert jnp.allclose(losses["total_loss"], loss)

    # Multi-block grid (row_block override -> 4 blocks), exact-multiple case.
    B2, T2, D2 = 8, 64, 8     # 4096 elements = 32 rows of 128
    kk1, kk2, kk3 = jax.random.split(jax.random.PRNGKey(1), 3)
    y2 = jax.random.normal(kk1, (B2, T2, D2), dtype=jnp.float32)
    y2h = jax.random.normal(kk2, (B2, T2, D2), dtype=jnp.float32)
    y2 = jnp.where(jax.random.bernoulli(kk3, 0.3, y2.shape), jnp.nan, y2)
    s2, c2 = masked_mse_pallas(y2h, y2, row_block=8)
    jax.block_until_ready(s2)
    m2 = ~jnp.isnan(y2)
    ref2 = jnp.sum(jnp.where(m2, y2h - y2, 0.0) ** 2) / jnp.sum(m2)
    assert jnp.allclose(s2 / c2, ref2, rtol=1e-5, atol=1e-6), (s2 / c2, ref2)

    # Ragged last block (rows not divisible by row_block) -> cold pl.when path.
    B3, T3, D3 = 5, 128, 8    # 5120 elements = 40 rows of 128; row_block=16 -> 3 blocks
    kj1, kj2, kj3 = jax.random.split(jax.random.PRNGKey(2), 3)
    y3 = jax.random.normal(kj1, (B3, T3, D3), dtype=jnp.float32)
    y3h = jax.random.normal(kj2, (B3, T3, D3), dtype=jnp.float32)
    y3 = jnp.where(jax.random.bernoulli(kj3, 0.25, y3.shape), jnp.nan, y3)
    s3, c3 = masked_mse_pallas(y3h, y3, row_block=16)
    jax.block_until_ready(s3)
    m3 = ~jnp.isnan(y3)
    ref3 = jnp.sum(jnp.where(m3, y3h - y3, 0.0) ** 2) / jnp.sum(m3)
    assert jnp.allclose(s3 / c3, ref3, rtol=1e-5, atol=1e-6), (s3 / c3, ref3)

    print("KERNEL_OK")
</pallas_src>

<mosaic_0001>
module attributes {stable_mosaic.version = 11 : i64} {
  func.func @_masked_mse_kernel(%arg0: i32, %arg1: i32, %arg2: memref<8x128xf32, #tpu.memory_space<vmem>>, %arg3: memref<8x128xf32, #tpu.memory_space<vmem>>, %arg4: memref<8x128xf32, #tpu.memory_space<vmem>>, %arg5: memref<8x128xf32, #tpu.memory_space<vmem>>, %arg6: memref<8x128xi32, #tpu.memory_space<vmem>>) attributes {dimension_semantics = [#tpu.dimension_semantics<arbitrary>, #tpu.dimension_semantics<arbitrary>], iteration_bounds = array<i64: 1, 1>, scalar_prefetch = 0 : i64, scratch_operands = 2 : i64, tpu.core_type = #tpu.core_type<tc>, window_params = [{transform_indices = @transform_0, window_bounds = array<i64: 8, 128>}, {transform_indices = @transform_1, window_bounds = array<i64: 8, 128>}, {transform_indices = @transform_2, window_bounds = array<i64: 8, 128>}]} {
    %c0_i32 = arith.constant 0 : i32
    %0 = arith.cmpi eq, %arg1, %c0_i32 : i32
    %1 = arith.extui %0 : i1 to i32
    %c0_i32_0 = arith.constant 0 : i32
    %2 = arith.cmpi ne, %1, %c0_i32_0 : i32
    scf.if %2 {
      %cst = arith.constant 0.000000e+00 : f32
      %19 = vector.broadcast %cst : f32 to vector<8x128xf32>
      %c0_12 = arith.constant 0 : index
      %c0_13 = arith.constant 0 : index
      %20 = vector.load %arg5[%c0_12, %c0_13] : memref<8x128xf32, #tpu.memory_space<vmem>>, vector<8x128xf32>
      tpu.vector_store %arg5[%c0_12, %c0_13], %19 {strides = array<i32>} : memref<8x128xf32, #tpu.memory_space<vmem>>, vector<8x128xf32>,
      %c0_i32_14 = arith.constant 0 : i32
      %21 = vector.broadcast %c0_i32_14 : i32 to vector<8x128xi32>
      %c0_15 = arith.constant 0 : index
      %c0_16 = arith.constant 0 : index
      %22 = vector.load %arg6[%c0_15, %c0_16] : memref<8x128xi32, #tpu.memory_space<vmem>>, vector<8x128xi32>
      tpu.vector_store %arg6[%c0_15, %c0_16], %21 {strides = array<i32>} : memref<8x128xi32, #tpu.memory_space<vmem>>, vector<8x128xi32>,
    } else {
    }
    %c0 = arith.constant 0 : index
    %c0_1 = arith.constant 0 : index
    %3 = vector.load %arg3[%c0, %c0_1] : memref<8x128xf32, #tpu.memory_space<vmem>>, vector<8x128xf32>
    %c0_2 = arith.constant 0 : index
    %c0_3 = arith.constant 0 : index
    %4 = vector.load %arg2[%c0_2, %c0_3] : memref<8x128xf32, #tpu.memory_space<vmem>>, vector<8x128xf32>
    %c1_i32 = arith.constant 1 : i32
    %5 = arith.muli %arg0, %c1_i32 : i32
    %6 = arith.addi %5, %arg1 : i32
    %c8_i32 = arith.constant 8 : i32
    %7 = arith.muli %6, %c8_i32 : i32
    %c8_i32_4 = arith.constant 8 : i32
    %8 = arith.addi %7, %c8_i32_4 : i32
    %c8_i32_5 = arith.constant 8 : i32
    %9 = arith.cmpi sle, %8, %c8_i32_5 : i32
    %10 = arith.extui %9 : i1 to i32
    %c0_i32_6 = arith.constant 0 : i32
    %11 = arith.cmpi ne, %10, %c0_i32_6 : i32
    scf.if %11 {
      %19 = arith.cmpf one, %3, %3 : vector<8x128xf32>
      %cst = arith.constant dense<true> : vector<8x128xi1>
      %20 = arith.xori %19, %cst : vector<8x128xi1>
      %21 = arith.subf %4, %3 : vector<8x128xf32>
      %cst_12 = arith.constant 0.000000e+00 : f32
      %22 = vector.broadcast %cst_12 : f32 to vector<8x128xf32>
      %23 = arith.select %20, %21, %22 : vector<8x128xi1>, vector<8x128xf32>
      %c0_13 = arith.constant 0 : index
      %c0_14 = arith.constant 0 : index
      %24 = vector.load %arg5[%c0_13, %c0_14] : memref<8x128xf32, #tpu.memory_space<vmem>>, vector<8x128xf32>
      %25 = arith.mulf %23, %23 : vector<8x128xf32>
      %26 = vector.shape_cast %25 : vector<8x128xf32> to vector<1x8x128xf32>
      %cst_15 = arith.constant dense<0.000000e+00> : vector<8x128xf32>
      %27 = vector.multi_reduction <add>, %26, %cst_15 [0] : vector<1x8x128xf32> to vector<8x128xf32>
      %28 = arith.addf %24, %27 : vector<8x128xf32>
      %c0_16 = arith.constant 0 : index
      %c0_17 = arith.constant 0 : index
      %29 = vector.load %arg5[%c0_16, %c0_17] : memref<8x128xf32, #tpu.memory_space<vmem>>, vector<8x128xf32>
      tpu.vector_store %arg5[%c0_16, %c0_17], %28 {strides = array<i32>} : memref<8x128xf32, #tpu.memory_space<vmem>>, vector<8x128xf32>,
      %c0_18 = arith.constant 0 : index
      %c0_19 = arith.constant 0 : index
      %30 = vector.load %arg6[%c0_18, %c0_19] : memref<8x128xi32, #tpu.memory_space<vmem>>, vector<8x128xi32>
      %31 = arith.extui %20 : vector<8x128xi1> to vector<8x128xi32>
      %32 = vector.shape_cast %31 : vector<8x128xi32> to vector<1x8x128xi32>
      %cst_20 = arith.constant dense<0> : vector<8x128xi32>
      %33 = vector.multi_reduction <add>, %32, %cst_20 [0] : vector<1x8x128xi32> to vector<8x128xi32>
      %34 = arith.addi %30, %33 : vector<8x128xi32>
      %c0_21 = arith.constant 0 : index
      %c0_22 = arith.constant 0 : index
      %35 = vector.load %arg6[%c0_21, %c0_22] : memref<8x128xi32, #tpu.memory_space<vmem>>, vector<8x128xi32>
      tpu.vector_store %arg6[%c0_21, %c0_22], %34 {strides = array<i32>} : memref<8x128xi32, #tpu.memory_space<vmem>>, vector<8x128xi32>,
    } else {
    }
    %c8_i32_7 = arith.constant 8 : i32
    %12 = arith.addi %7, %c8_i32_7 : i32
    %c8_i32_8 = arith.constant 8 : i32
    %13 = arith.cmpi sgt, %12, %c8_i32_8 : i32
    %14 = arith.extui %13 : i1 to i32
    %c0_i32_9 = arith.constant 0 : i32
    %15 = arith.cmpi ne, %14, %c0_i32_9 : i32
    scf.if %15 {
      %19 = tpu.iota {dimensions = array<i32: 0>} : vector<8x128xi32>
      %20 = vector.broadcast %7 : i32 to vector<8x128xi32>
      %21 = arith.addi %20, %19 : vector<8x128xi32>
      %c8_i32_12 = arith.constant 8 : i32
      %22 = vector.broadcast %c8_i32_12 : i32 to vector<8x128xi32>
      %23 = arith.cmpi slt, %21, %22 : vector<8x128xi32>
      %24 = arith.cmpf one, %3, %3 : vector<8x128xf32>
      %cst = arith.constant dense<true> : vector<8x128xi1>
      %25 = arith.xori %24, %cst : vector<8x128xi1>
      %26 = arith.andi %23, %25 : vector<8x128xi1>
      %27 = arith.subf %4, %3 : vector<8x128xf32>
      %cst_13 = arith.constant 0.000000e+00 : f32
      %28 = vector.broadcast %cst_13 : f32 to vector<8x128xf32>
      %29 = arith.select %26, %27, %28 : vector<8x128xi1>, vector<8x128xf32>
      %c0_14 = arith.constant 0 : index
      %c0_15 = arith.constant 0 : index
      %30 = vector.load %arg5[%c0_14, %c0_15] : memref<8x128xf32, #tpu.memory_space<vmem>>, vector<8x128xf32>
      %31 = arith.mulf %29, %29 : vector<8x128xf32>
      %32 = vector.shape_cast %31 : vector<8x128xf32> to vector<1x8x128xf32>
      %cst_16 = arith.constant dense<0.000000e+00> : vector<8x128xf32>
      %33 = vector.multi_reduction <add>, %32, %cst_16 [0] : vector<1x8x128xf32> to vector<8x128xf32>
      %34 = arith.addf %30, %33 : vector<8x128xf32>
      %c0_17 = arith.constant 0 : index
      %c0_18 = arith.constant 0 : index
      %35 = vector.load %arg5[%c0_17, %c0_18] : memref<8x128xf32, #tpu.memory_space<vmem>>, vector<8x128xf32>
      tpu.vector_store %arg5[%c0_17, %c0_18], %34 {strides = array<i32>} : memref<8x128xf32, #tpu.memory_space<vmem>>, vector<8x128xf32>,
      %c0_19 = arith.constant 0 : index
      %c0_20 = arith.constant 0 : index
      %36 = vector.load %arg6[%c0_19, %c0_20] : memref<8x128xi32, #tpu.memory_space<vmem>>, vector<8x128xi32>
      %37 = arith.extui %26 : vector<8x128xi1> to vector<8x128xi32>
      %38 = vector.shape_cast %37 : vector<8x128xi32> to vector<1x8x128xi32>
      %cst_21 = arith.constant dense<0> : vector<8x128xi32>
      %39 = vector.multi_reduction <add>, %38, %cst_21 [0] : vector<1x8x128xi32> to vector<8x128xi32>
      %40 = arith.addi %36, %39 : vector<8x128xi32>
      %c0_22 = arith.constant 0 : index
      %c0_23 = arith.constant 0 : index
      %41 = vector.load %arg6[%c0_22, %c0_23] : memref<8x128xi32, #tpu.memory_space<vmem>>, vector<8x128xi32>
      tpu.vector_store %arg6[%c0_22, %c0_23], %40 {strides = array<i32>} : memref<8x128xi32, #tpu.memory_space<vmem>>, vector<8x128xi32>,
    } else {
    }
    %c0_i32_10 = arith.constant 0 : i32
    %16 = arith.cmpi eq, %arg1, %c0_i32_10 : i32
    %17 = arith.extui %16 : i1 to i32
    %c0_i32_11 = arith.constant 0 : i32
    %18 = arith.cmpi ne, %17, %c0_i32_11 : i32
    scf.if %18 {
      %c0_12 = arith.constant 0 : index
      %c0_13 = arith.constant 0 : index
      %19 = vector.load %arg5[%c0_12, %c0_13] : memref<8x128xf32, #tpu.memory_space<vmem>>, vector<8x128xf32>
      %20 = vector.shape_cast %19 : vector<8x128xf32> to vector<1x8x128xf32>
      %cst = arith.constant dense<0.000000e+00> : vector<1xf32>
      %21 = vector.multi_reduction <add>, %20, %cst [1, 2] : vector<1x8x128xf32> to vector<1xf32>
      %22 = vector.shape_cast %21 : vector<1xf32> to vector<1x1x1xf32>
      %23 = vector.extract %22[0, 0, 0] : f32 from vector<1x1x1xf32>
      %c0_14 = arith.constant 0 : index
      %c0_15 = arith.constant 0 : index
      %24 = vector.load %arg6[%c0_14, %c0_15] : memref<8x128xi32, #tpu.memory_space<vmem>>, vector<8x128xi32>
      %25 = vector.shape_cast %24 : vector<8x128xi32> to vector<1x8x128xi32>
      %cst_16 = arith.constant dense<0> : vector<1xi32>
      %26 = vector.multi_reduction <add>, %25, %cst_16 [1, 2] : vector<1x8x128xi32> to vector<1xi32>
      %27 = vector.shape_cast %26 : vector<1xi32> to vector<1x1x1xi32>
      %28 = vector.extract %27[0, 0, 0] : i32 from vector<1x1x1xi32>
      %29 = arith.sitofp %28 : i32 to f32
      %30 = tpu.iota {dimensions = array<i32: 1>} : vector<8x128xi32>
      %c0_i32_17 = arith.constant 0 : i32
      %31 = vector.broadcast %c0_i32_17 : i32 to vector<8x128xi32>
      %32 = arith.cmpi eq, %30, %31 : vector<8x128xi32>
      %c1_i32_18 = arith.constant 1 : i32
      %33 = vector.broadcast %c1_i32_18 : i32 to vector<8x128xi32>
      %34 = arith.cmpi eq, %30, %33 : vector<8x128xi32>
      %cst_19 = arith.constant 0.000000e+00 : f32
      %35 = vector.broadcast %29 : f32 to vector<8x128xf32>
      %36 = vector.broadcast %cst_19 : f32 to vector<8x128xf32>
      %37 = arith.select %34, %35, %36 : vector<8x128xi1>, vector<8x128xf32>
      %38 = vector.broadcast %23 : f32 to vector<8x128xf32>
      %39 = arith.select %32, %38, %37 : vector<8x128xi1>, vector<8x128xf32>
      %c0_20 = arith.constant 0 : index
      %c0_21 = arith.constant 0 : index
      %40 = vector.load %arg4[%c0_20, %c0_21] : memref<8x128xf32, #tpu.memory_space<vmem>>, vector<8x128xf32>
      tpu.vector_store %arg4[%c0_20, %c0_21], %39 {strides = array<i32>} : memref<8x128xf32, #tpu.memory_space<vmem>>, vector<8x128xf32>,
    } else {
    }
    return
  }
  func.func @transform_0(%arg0: i32, %arg1: i32) -> (i32, i32) {
    %c1_i32 = arith.constant 1 : i32
    %0 = arith.muli %arg0, %c1_i32 : i32
    %1 = arith.addi %0, %arg1 : i32
    %c0_i32 = arith.constant 0 : i32
    %2 = arith.minsi %1, %c0_i32 : i32
    %c0_i32_0 = arith.constant 0 : i32
    %c0_i32_1 = arith.constant 0 : i32
    return %2, %c0_i32_0 : i32, i32
  }
  func.func @transform_1(%arg0: i32, %arg1: i32) -> (i32, i32) {
    %c1_i32 = arith.constant 1 : i32
    %0 = arith.muli %arg0, %c1_i32 : i32
    %1 = arith.addi %0, %arg1 : i32
    %c0_i32 = arith.constant 0 : i32
    %2 = arith.minsi %1, %c0_i32 : i32
    %c0_i32_0 = arith.constant 0 : i32
    %c0_i32_1 = arith.constant 0 : i32
    return %2, %c0_i32_0 : i32, i32
  }
  func.func @transform_2(%arg0: i32, %arg1: i32) -> (i32, i32) {
    %c0_i32 = arith.constant 0 : i32
    %c0_i32_0 = arith.constant 0 : i32
    return %arg0, %c0_i32 : i32, i32
  }
}

</mosaic_0001>

<llo_original>
// kernel: tpu_custom_call.1
$region0: #{tpu_custom_call.1}
  #allocation0 [shape = 'u32[]', space=smem, size = 0x4, offset = 0x4, fixed_abs, tag = 'smem constant byte address 0x4 - core index']
  #allocation1 [shape = 'u32[72,128]{1,0:T(1,128)}', space=vmem, size = 0x9000, scoped, tag = 'internal scratch']
  #allocation2 [shape = 'f32[8,128]{1,0:T(8,128)}', space=vmem, size = 0x1000, scoped, tag = 'scratch operand']
  #allocation3 [shape = 's32[8,128]{1,0:T(8,128)}', space=vmem, size = 0x1000, scoped, tag = 'scratch operand']
  %s0 = inlined_call_operand.hbm [shape: f32[8,128], index: 0, kind: input, shape index: {}]
  %s1 = inlined_call_operand.hbm [shape: f32[8,128], index: 1, kind: input, shape index: {}]
  %s2 = inlined_call_operand.hbm [shape: f32[8,128], index: 2, kind: output, shape index: {}]
  %s3 = sld [smem:[#allocation0]]
  $region42: #{tpu_custom_call.1} parent=0
    _
  %s5 = ssub.s32 1, %s3
  %s6 = scalar_select 0, %s5, %s3
  $region1: #{tpu_custom_call.1} parent=0
    #allocation4 [shape = 'u8[4096]{0}', space=vmem, size = 0x1000, scoped, tag = 'input window, operand 0, single buffered']
    #allocation5 [shape = 's32[1]{0}', space=sflag, size = 0x4, scoped, tag = 'scoped memory for tpu_custom_call.1']
    #allocation6 [shape = 's32[1]{0}', space=sflag, size = 0x4, scoped, tag = 'scoped memory for tpu_custom_call.1']
    #allocation7 [shape = 'u8[4096]{0}', space=vmem, size = 0x1000, scoped, tag = 'input window, operand 1, single buffered']
    #allocation8 [shape = 's32[1]{0}', space=sflag, size = 0x4, scoped, tag = 'scoped memory for tpu_custom_call.1']
    #allocation9 [shape = 'u8[4096]{0}', space=vmem, size = 0x1000, scoped, tag = 'output window, operand 0, single buffered']
    %7 = vsyncpa [#allocation5], 0
    %8 = vsyncpa [#allocation8], 0
    %9 = vsyncpa [#allocation6], 0
    // Predicated region
    $region2: #{tpu_custom_call.1} parent=1 // pred_check
      _
    $region3: #{tpu_custom_call.1} parent=1 // pred_check_branch
      %11 = sbr.rel (0) target = $region5
    $region4: #{tpu_custom_call.1} parent=1 // pred_region
      %s12 = sadd.s32 0, 0
      %p13 = scmp.lt.s32.totalorder %s12, 0
      %s14 = scalar_select %p13, %s12, 0
      %16 = vsyncadd [#allocation5], 0
      %s17 = smul.addr %s14, 8
      %s18 = scalar_lea.hbm %s0, %s17
      %s20 = sshll.u32 %s18, 4
      %s21 = int_to_ptr.hbm [resolvable:$true] %s20
      %s22 = sshll.u32 [#allocation4], 4
      %s23 = int_to_ptr.vmem [resolvable:$true] %s22
      %25 = dma.hbm_to_vmem [thread:$0]  %s21, 128, %s23, [#allocation5]
    $region5: #{tpu_custom_call.1} parent=1 // pred_fallthru
      _
    // Predicated region
    $region6: #{tpu_custom_call.1} parent=1 // pred_check
      _
    $region7: #{tpu_custom_call.1} parent=1 // pred_check_branch
      %27 = sbr.rel (0) target = $region9
    $region8: #{tpu_custom_call.1} parent=1 // pred_region
      %s28 = sadd.s32 0, 0
      %p29 = scmp.lt.s32.totalorder %s28, 0
      %s30 = scalar_select %p29, %s28, 0
      %32 = vsyncadd [#allocation8], 0
      %s33 = smul.addr %s30, 8
      %s34 = scalar_lea.hbm %s1, %s33
      %s36 = sshll.u32 %s34, 4
      %s37 = int_to_ptr.hbm [resolvable:$true] %s36
      %s38 = sshll.u32 [#allocation7], 4
      %s39 = int_to_ptr.vmem [resolvable:$true] %s38
      %41 = dma.hbm_to_vmem [thread:$0]  %s37, 128, %s39, [#allocation8]
    $region9: #{tpu_custom_call.1} parent=1 // pred_fallthru
      _
    // Predicated region
    $region10: #{tpu_custom_call.1} parent=1 // pred_check
      _
    $region11: #{tpu_custom_call.1} parent=1 // pred_check_branch
      %43 = sbr.rel (0) target = $region13
    $region12: #{tpu_custom_call.1} parent=1 // pred_region
      %45 = dma.done [#allocation5], 128
    $region13: #{tpu_custom_call.1} parent=1 // pred_fallthru
      _
    // Predicated region
    $region14: #{tpu_custom_call.1} parent=1 // pred_check
      _
    $region15: #{tpu_custom_call.1} parent=1 // pred_check_branch
      %47 = sbr.rel (0) target = $region17
    $region16: #{tpu_custom_call.1} parent=1 // pred_region
      %49 = dma.done [#allocation8], 128
    $region17: #{tpu_custom_call.1} parent=1 // pred_fallthru
      _
    %s50 = sadd.s32 0, 0
    %p51 = scmp.lt.s32.totalorder %s50, 0
    %s52 = scalar_select %p51, %s50, 0
    %s53 = sadd.s32 0, 0
    %p54 = scmp.lt.s32.totalorder %s53, 0
    %s55 = scalar_select %p54, %s53, 0
    %p56 = scmp.eq.s32.totalorder 0, 0
    // Predicated region
    $region18: #{tpu_custom_call.1} parent=1 // pred_check
      %p57 = pneg %p56
    $region19: #{tpu_custom_call.1} parent=1 // pred_check_branch
      %59 = sbr.rel (%p57) target = $region21
    $region20: #{tpu_custom_call.1} parent=1 // pred_region
      %60 = vst [vmem:[#allocation2] sm:$0xff] 0.0
      %61 = vst [vmem:[#allocation3] sm:$0xff] 0
    $region21: #{tpu_custom_call.1} parent=1 // pred_fallthru
      _
    %v62 = vld [vmem:[#allocation7] sm:$0xff]
    %v63 = vld [vmem:[#allocation4] sm:$0xff]
    %s64 = sadd.s32 0, 0
    %s65 = smul.u32 %s64, 8
    %s66 = sadd.s32 %s65, 8
    %p67 = scmp.le.s32.totalorder %s66, 8
    // Predicated region
    $region22: #{tpu_custom_call.1} parent=1 // pred_check
      %p68 = pneg %p67
    $region23: #{tpu_custom_call.1} parent=1 // pred_check_branch
      %70 = sbr.rel (%p68) target = $region25
    $region24: #{tpu_custom_call.1} parent=1 // pred_region
      %vm71 = vcmp.ne.f32.partialorder %v62, %v62
      %vm72 = vmxor %vm71, 1
      %v73 = vsub.f32 %v63, %v62
      %v74 = vsel %vm72, %v73, 0.0
      %v75 = vld [vmem:[#allocation2] sm:$0xff]
      %v76 = vmul.f32 %v74, %v74
      %v77 = vadd.f32 %v76, 0.0
      %v78 = vadd.f32 %v75, %v77
      %79 = vst [vmem:[#allocation2] sm:$0xff] %v78
      %v80 = vld [vmem:[#allocation3] sm:$0xff]
      %v81 = vsel %vm72, 1, 0
      %v82 = vadd.s32 %v80, %v81
      %83 = vst [vmem:[#allocation3] sm:$0xff] %v82
    $region25: #{tpu_custom_call.1} parent=1 // pred_fallthru
      _
    %p84 = scmp.gt.s32.totalorder %s66, 8
    // Predicated region
    $region26: #{tpu_custom_call.1} parent=1 // pred_check
      %p85 = pneg %p84
    $region27: #{tpu_custom_call.1} parent=1 // pred_check_branch
      %87 = sbr.rel (%p85) target = $region29
    $region28: #{tpu_custom_call.1} parent=1 // pred_region
      %v88 = vlaneseq
      %v89 = vshrl.u32 %v88, 7
      %v90 = vstv %s65
      %v91 = vadd.s32 %v90, %v89
      %vm92 = vcmp.lt.s32.totalorder %v91, 8
      %vm93 = vcmp.ne.f32.partialorder %v62, %v62
      %vm94 = vmxor %vm93, 1
      %vm95 = vmand %vm92, %vm94
      %v96 = vsub.f32 %v63, %v62
      %v97 = vsel %vm95, %v96, 0.0
      %v98 = vld [vmem:[#allocation2] sm:$0xff]
      %v99 = vmul.f32 %v97, %v97
      %v100 = vadd.f32 %v99, 0.0
      %v101 = vadd.f32 %v98, %v100
      %102 = vst [vmem:[#allocation2] sm:$0xff] %v101
      %v103 = vld [vmem:[#allocation3] sm:$0xff]
      %v104 = vsel %vm95, 1, 0
      %v105 = vadd.s32 %v103, %v104
      %106 = vst [vmem:[#allocation3] sm:$0xff] %v105
    $region29: #{tpu_custom_call.1} parent=1 // pred_fallthru
      _
    // Predicated region
    $region30: #{tpu_custom_call.1} parent=1 // pred_check
      %p107 = pneg %p56
    $region31: #{tpu_custom_call.1} parent=1 // pred_check_branch
      %109 = sbr.rel (%p107) target = $region33
    $region32: #{tpu_custom_call.1} parent=1 // pred_region
      %v110 = vld [vmem:[#allocation2] sm:$0xff]
      %111 = vadd.xlane.f32.xlu0 %v110
      %v112 = vpop.xlane.xlu0 %111
      %v113 = vrot.slane %v112, 4
      %v114 = vadd.f32 %v112, %v113
      %v115 = vrot.slane %v114, 2
      %v116 = vadd.f32 %v114, %v115
      %v117 = vrot.slane %v116, 1
      %v118 = vadd.f32 %v116, %v117
      %s119 = vtos %v118
      %v120 = vld [vmem:[#allocation3] sm:$0xff]
      %v121 = vand.u32 %v120, 65535
      %v122 = vshrl.u32 %v120, 16
      %v123 = vcvt.s32.f32 %v121
      %v124 = vcvt.s32.f32 %v122
      %125 = vadd.xlane.f32.xlu0 %v123
      %v126 = vpop.xlane.xlu0 %125
      %127 = vadd.xlane.f32.xlu0 %v124
      %v128 = vpop.xlane.xlu0 %127
      %v129 = vcvt.f32.s32 %v126
      %v130 = vcvt.f32.s32 %v128
      %v131 = vshll.u32 %v130, 16
      %v132 = vadd.s32 %v131, %v129
      %v133 = vrot.slane %v132, 4
      %v134 = vadd.s32 %v132, %v133
      %v135 = vrot.slane %v134, 2
      %v136 = vadd.s32 %v134, %v135
      %v137 = vrot.slane %v136, 1
      %v138 = vadd.s32 %v136, %v137
      %s139 = vtos %v138
      %s140 = scvt.s32.f32 %s139
      %v141 = vlaneseq
      %v142 = vand.u32 %v141, 127
      %vm143 = vcmp.eq.s32.totalorder %v142, 0
      %vm144 = vcmp.eq.s32.totalorder %v142, 1
      %v145 = vstv %s140
      %v146 = vsel %vm144, %v145, 0.0
      %v147 = vstv %s119
      %v148 = vsel %vm143, %v147, %v146
      %149 = vst [vmem:[#allocation9] sm:$0xff] %v148
    $region33: #{tpu_custom_call.1} parent=1 // pred_fallthru
      _
    // Predicated region
    $region34: #{tpu_custom_call.1} parent=1 // pred_check
      _
    $region35: #{tpu_custom_call.1} parent=1 // pred_check_branch
      %151 = sbr.rel (0) target = $region37
    $region36: #{tpu_custom_call.1} parent=1 // pred_region
      %153 = vsyncadd [#allocation6], 0
      %s155 = sshll.u32 [#allocation9], 4
      %s156 = int_to_ptr.vmem [resolvable:$true] %s155
      %s157 = sshll.u32 %s2, 4
      %s158 = int_to_ptr.hbm [resolvable:$true] %s157
      %160 = dma.vmem_to_hbm [thread:$0]  %s156, 128, %s158, [#allocation6]
    $region37: #{tpu_custom_call.1} parent=1 // pred_fallthru
      _
    // Predicated region
    $region38: #{tpu_custom_call.1} parent=1 // pred_check
      _
    $region39: #{tpu_custom_call.1} parent=1 // pred_check_branch
      %162 = sbr.rel (0) target = $region41
    $region40: #{tpu_custom_call.1} parent=1 // pred_region
      %164 = dma.done [#allocation6], 128
    $region41: #{tpu_custom_call.1} parent=1 // pred_fallthru
      _
    %165 = vsyncpa [#allocation5], 1
    %166 = vsyncpa [#allocation8], 1
    %167 = vsyncpa [#allocation6], 1

</llo_original>
